<compile_context>
chip_gen: v7x
topology: tpu7x:2x2x1
jax: 0.10.0
libtpu: 0.0.40
codegen_flags: <defaults>
</compile_context>

<pallas_src>
import functools

import jax
import jax.numpy as jnp
from jax.experimental import pallas as pl
from jax.experimental.pallas import tpu as pltpu

EMBD_SIZE = 128
DROPOUT_P = 0.2  # nn.Dropout(0.2); identity in eval mode (see TODO in kernel).

# Large-but-finite mask value: avoids -inf arithmetic (inf-inf -> NaN) in the
# online softmax while exp() still underflows to exactly 0.
_MASK_VALUE = -0.7 * float(jnp.finfo(jnp.float32).max)


# ----------------------------------------------------------------------------
# Kernel body
# ----------------------------------------------------------------------------
def _attention_body(x_q_ref, x_kv_ref, wq_ref, wk_ref, wv_ref, mask_ref,
                    o_ref, q_sc, m_sc, l_sc, acc_sc, *, causal):
    bblk, tq, c = x_q_ref.shape
    tk = x_kv_ref.shape[1]
    h = wq_ref.shape[1]
    qi = pl.program_id(1)
    ki = pl.program_id(2)

    @pl.when(ki == 0)
    def _init():
        # Project the query tile once per (batch-block, q-tile).  The softmax
        # scale is already folded into wq; x is cast f32->bf16 in-VMEM.
        xq = x_q_ref[...].astype(jnp.bfloat16).reshape(bblk * tq, c)
        q = jnp.dot(xq, wq_ref[...], preferred_element_type=jnp.float32)
        q_sc[...] = q.reshape(bblk, tq, h).astype(jnp.bfloat16)
        m_sc[...] = jnp.full(m_sc.shape, _MASK_VALUE, m_sc.dtype)
        l_sc[...] = jnp.zeros(l_sc.shape, l_sc.dtype)
        acc_sc[...] = jnp.zeros(acc_sc.shape, acc_sc.dtype)

    # Project k / v for this kv tile (bf16 MXU operands, f32 accumulation).
    xkv = x_kv_ref[...].astype(jnp.bfloat16).reshape(bblk * tk, c)
    k = jnp.dot(xkv, wk_ref[...], preferred_element_type=jnp.float32)
    v = jnp.dot(xkv, wv_ref[...], preferred_element_type=jnp.float32)
    k = k.reshape(bblk, tk, h).astype(jnp.bfloat16)
    v = v.reshape(bblk, tk, h).astype(jnp.bfloat16)

    # Scores for this (q-tile, kv-tile): contract the head dim directly
    # (no explicit transpose).
    s = jnp.einsum('bqd,bkd->bqk', q_sc[...], k,
                   preferred_element_type=jnp.float32)

    if causal:
        row = qi * tq + jax.lax.broadcasted_iota(jnp.int32, (tq, tk), 0)
        col = ki * tk + jax.lax.broadcasted_iota(jnp.int32, (tq, tk), 1)
        s = jnp.where((col <= row)[None, :, :], s, _MASK_VALUE)
    if mask_ref is not None:
        s = s + mask_ref[...][None, :, :]

    # Online (flash-style) softmax update, all in f32.
    m_prev = m_sc[...]
    m_new = jnp.maximum(m_prev, jnp.max(s, axis=-1, keepdims=True))
    alpha = jnp.exp(m_prev - m_new)
    p = jnp.exp(s - m_new)
    l_sc[...] = alpha * l_sc[...] + jnp.sum(p, axis=-1, keepdims=True)
    acc_sc[...] = alpha * acc_sc[...] + jnp.einsum(
        'bqk,bkd->bqd', p.astype(jnp.bfloat16), v,
        preferred_element_type=jnp.float32)
    m_sc[...] = m_new

    # TODO(synk): nn.Dropout(0.2) on the attention weights is the identity in
    # eval mode; training-mode dropout would use pltpu.prng_seed +
    # pltpu.prng_random_bits on `p` here.

    @pl.when(ki == pl.num_programs(2) - 1)
    def _finalize():
        inv_l = pl.reciprocal(l_sc[...], approx=True)
        o_ref[...] = (acc_sc[...] * inv_l).astype(o_ref.dtype)


def _make_kernel(causal, has_mask):
    if has_mask:
        def kernel(x_q, x_kv, wq, wk, wv, msk, o, q_sc, m_sc, l_sc, acc_sc):
            _attention_body(x_q, x_kv, wq, wk, wv, msk, o,
                            q_sc, m_sc, l_sc, acc_sc, causal=causal)
    else:
        def kernel(x_q, x_kv, wq, wk, wv, o, q_sc, m_sc, l_sc, acc_sc):
            _attention_body(x_q, x_kv, wq, wk, wv, None, o,
                            q_sc, m_sc, l_sc, acc_sc, causal=causal)
    return kernel


# ----------------------------------------------------------------------------
# Sizing heuristics
# ----------------------------------------------------------------------------
def _tpu_vmem_capacity_bytes():
    try:
        info = pltpu.get_tpu_info()
        cap = getattr(info, "vmem_capacity_bytes", None)
        if cap:
            return int(cap)
    except Exception:
        pass
    return 64 * 1024 * 1024  # conservative (v7x-sized) fallback


def _num_tensorcores(vmem_cap):
    # Heuristic: v7x has 64 MiB VMEM per TC and 2 TCs/chip; v5e/v6e have
    # 128 MiB and a single TC.
    return 2 if vmem_cap < 96 * 1024 * 1024 else 1


def _pick_tile(T, cap, align):
    """Largest tile that divides T, is <= cap and aligned; falls back to T."""
    if T <= cap:
        return T
    start = (cap // align) * align
    for t in range(start, 0, -align):
        if T % t == 0:
            return t
    for t in range(min(cap, T), 0, -1):
        if T % t == 0 and t % 8 == 0:
            return t
    return T


def _vmem_bytes_estimate(bblk, tq, tk, c, h, has_mask):
    f32, bf16 = 4, 2
    hpad = max(h, 128)  # lane padding for H < 128
    est = 2 * (bblk * tq * c * f32          # x q-tile block (double-buffered)
               + bblk * tk * c * f32        # x kv-tile block
               + 3 * c * hpad * bf16        # Wq / Wk / Wv
               + bblk * tq * hpad * f32)    # output block
    if has_mask:
        est += 2 * tq * tk * f32
    # Persistent scratch (q tile, acc, m, l).
    est += bblk * tq * hpad * (bf16 + f32) + 2 * bblk * tq * 128 * f32
    # Live intermediates: bf16 x casts, k/v tiles, score block + exp.
    est += bblk * (tq + tk) * c * bf16
    est += 2 * bblk * tk * hpad * bf16
    est += 2 * bblk * tq * tk * f32
    return est


def _pick_block_batch(B, nq, num_tc, fits):
    """Largest batch block that fits VMEM; on multi-TC chips prefer keeping
    >= 2 parallel grid steps per TensorCore (so the pipeline can overlap)."""
    divs = sorted((d for d in range(1, B + 1) if B % d == 0), reverse=True)
    step_targets = (2 * num_tc, num_tc, 1) if num_tc > 1 else (1,)
    for min_steps in step_targets:
        for bblk in divs:
            if (B // bblk) * nq >= min_steps and fits(bblk):
                return bblk
    return 1


# ----------------------------------------------------------------------------
# Wrapper
# ----------------------------------------------------------------------------
def head_forward(x, w_key, w_query, w_value, mask=None, *, causal=False,
                 block_b=None, block_q=None, block_k=None,
                 out_dtype=jnp.float32):
    """Pallas implementation of Head.forward (eval mode).

    Args:
      x: (B, T, C) float32, C == EMBD_SIZE.
      w_key, w_query, w_value: (head_size, C) — PyTorch nn.Linear weight layout.
      mask: optional (T, T) additive mask (broadcast over batch), or None.
      causal: if True, apply an in-kernel causal mask (no (T,T) mask DMA).
    Returns:
      (B, T, head_size) array of `out_dtype` (default float32).
    """
    B, T, C = x.shape
    H = w_key.shape[0]
    assert C == EMBD_SIZE and w_key.shape == (H, C)
    assert w_query.shape == (H, C) and w_value.shape == (H, C)

    # Softmax scale folded into Wq (removes an f32 pass over the scores).
    scale = float(H) ** -0.5
    wq = (w_query.T * scale).astype(jnp.bfloat16)
    wk = w_key.T.astype(jnp.bfloat16)
    wv = w_value.T.astype(jnp.bfloat16)

    vmem_cap = _tpu_vmem_capacity_bytes()
    budget = max(int(0.8 * vmem_cap), 32 * 1024 * 1024)
    num_tc = _num_tensorcores(vmem_cap)

    tq = block_q if block_q is not None else _pick_tile(T, cap=256, align=8)
    tk = block_k if block_k is not None else _pick_tile(T, cap=512, align=128)
    assert T % tq == 0 and T % tk == 0
    nq, nkv = T // tq, T // tk

    has_mask = mask is not None
    fits = lambda bb: _vmem_bytes_estimate(bb, tq, tk, C, H, has_mask) <= budget
    if block_b is not None:
        bblk = block_b
        assert B % bblk == 0
    else:
        bblk = _pick_block_batch(B, nq, num_tc, fits)
    grid = (B // bblk, nq, nkv)

    in_specs = [
        pl.BlockSpec((bblk, tq, C), lambda b, qi, ki: (b, qi, 0)),   # x (q tile)
        pl.BlockSpec((bblk, tk, C), lambda b, qi, ki: (b, ki, 0)),   # x (kv tile)
        pl.BlockSpec((C, H), lambda b, qi, ki: (0, 0)),              # Wq (scaled)
        pl.BlockSpec((C, H), lambda b, qi, ki: (0, 0)),              # Wk
        pl.BlockSpec((C, H), lambda b, qi, ki: (0, 0)),              # Wv
    ]
    args = [x, x, wq, wk, wv]
    if has_mask:
        mask_arr = jnp.asarray(mask, jnp.float32)
        assert mask_arr.shape == (T, T), "mask must be (T, T), broadcast over B"
        # Clamp -inf to a large finite value: keeps the online softmax free of
        # inf-inf NaNs while exp() still underflows to exactly 0.
        mask_arr = jnp.maximum(mask_arr, _MASK_VALUE)
        in_specs.append(pl.BlockSpec((tq, tk), lambda b, qi, ki: (qi, ki)))
        args.append(mask_arr)

    grid_spec = pltpu.PrefetchScalarGridSpec(
        num_scalar_prefetch=0,
        grid=grid,
        in_specs=in_specs,
        out_specs=pl.BlockSpec((bblk, tq, H), lambda b, qi, ki: (b, qi, 0)),
        scratch_shapes=[
            pltpu.VMEM((bblk, tq, H), jnp.bfloat16),   # projected q tile
            pltpu.VMEM((bblk, tq, 1), jnp.float32),    # running max  m
            pltpu.VMEM((bblk, tq, 1), jnp.float32),    # running sum  l
            pltpu.VMEM((bblk, tq, H), jnp.float32),    # running acc
        ],
    )

    return pl.pallas_call(
        _make_kernel(causal, has_mask),
        out_shape=jax.ShapeDtypeStruct((B, T, H), out_dtype),
        grid_spec=grid_spec,
        compiler_params=pltpu.CompilerParams(
            dimension_semantics=("parallel", "parallel", "arbitrary"),
            vmem_limit_bytes=int(budget),
        ),
    )(*args)


# ----------------------------------------------------------------------------
# Pure-JAX reference (mirrors the PyTorch forward, eval mode)
# ----------------------------------------------------------------------------
def _reference(x, w_key, w_query, w_value, mask=None):
    k = x @ w_key.T
    q = x @ w_query.T
    v = x @ w_value.T
    wei = (q @ jnp.swapaxes(k, -2, -1)) * (k.shape[-1] ** -0.5)
    if mask is not None:
        wei = wei + mask
    wei = jax.nn.softmax(wei, axis=-1)
    return wei @ v


if __name__ == "__main__":
    key = jax.random.PRNGKey(0)
    B, T, C = 2, 8, EMBD_SIZE
    head_size = 32

    kx, kk, kq, kv = jax.random.split(key, 4)
    x = jax.random.normal(kx, (B, T, C), jnp.float32)

    # Deterministic parameter init (PyTorch Linear-like uniform bound 1/sqrt(C)).
    bound = 1.0 / (C ** 0.5)
    w_key = jax.random.uniform(kk, (head_size, C), jnp.float32, -bound, bound)
    w_query = jax.random.uniform(kq, (head_size, C), jnp.float32, -bound, bound)
    w_value = jax.random.uniform(kv, (head_size, C), jnp.float32, -bound, bound)

    causal_mask = jnp.where(jnp.tril(jnp.ones((T, T), jnp.bool_)), 0.0,
                            -jnp.inf).astype(jnp.float32)
    tol = dict(atol=5e-2, rtol=5e-2)   # bf16 MXU operands, f32 accumulation

    # 1) Explicit additive mask (PyTorch-style call).
    out = jax.block_until_ready(
        head_forward(x, w_key, w_query, w_value, mask=causal_mask))
    ref = _reference(x, w_key, w_query, w_value, mask=causal_mask)
    assert out.shape == (B, T, head_size)
    assert jnp.allclose(out, ref, **tol), float(jnp.max(jnp.abs(out - ref)))

    # 2) In-kernel causal mask (no (T,T) mask DMA).
    out_c = jax.block_until_ready(
        head_forward(x, w_key, w_query, w_value, causal=True))
    assert jnp.allclose(out_c, ref, **tol), float(jnp.max(jnp.abs(out_c - ref)))

    # 3) No mask.
    out_nm = jax.block_until_ready(head_forward(x, w_key, w_query, w_value))
    ref_nm = _reference(x, w_key, w_query, w_value)
    assert jnp.allclose(out_nm, ref_nm, **tol)

    # 4) Multi-tile path: exercises the flash-style online-softmax accumulation
    #    across several kv tiles (both the explicit-mask and causal variants).
    T2 = 256
    x2 = jax.random.normal(jax.random.PRNGKey(1), (B, T2, C), jnp.float32)
    mask2 = jnp.where(jnp.tril(jnp.ones((T2, T2), jnp.bool_)), 0.0,
                      -jnp.inf).astype(jnp.float32)
    ref2 = _reference(x2, w_key, w_query, w_value, mask=mask2)
    out2 = jax.block_until_ready(
        head_forward(x2, w_key, w_query, w_value, mask=mask2,
                     block_q=128, block_k=128))
    assert jnp.allclose(out2, ref2, **tol), float(jnp.max(jnp.abs(out2 - ref2)))
    out2c = jax.block_until_ready(
        head_forward(x2, w_key, w_query, w_value, causal=True,
                     block_q=128, block_k=128))
    assert jnp.allclose(out2c, ref2, **tol)

    print("KERNEL_OK")
</pallas_src>

<mosaic_0001>
module attributes {stable_mosaic.version = 11 : i64} {
  func.func @kernel(%arg0: i32, %arg1: i32, %arg2: i32, %arg3: memref<1x8x128xf32, #tpu.memory_space<vmem>>, %arg4: memref<1x8x128xf32, #tpu.memory_space<vmem>>, %arg5: memref<128x32xbf16, #tpu.memory_space<vmem>>, %arg6: memref<128x32xbf16, #tpu.memory_space<vmem>>, %arg7: memref<128x32xbf16, #tpu.memory_space<vmem>>, %arg8: memref<8x8xf32, #tpu.memory_space<vmem>>, %arg9: memref<1x8x32xf32, #tpu.memory_space<vmem>>, %arg10: memref<1x8x32xbf16, #tpu.memory_space<vmem>>, %arg11: memref<1x8x1xf32, #tpu.memory_space<vmem>>, %arg12: memref<1x8x1xf32, #tpu.memory_space<vmem>>, %arg13: memref<1x8x32xf32, #tpu.memory_space<vmem>>) attributes {dimension_semantics = [#tpu.dimension_semantics<parallel>, #tpu.dimension_semantics<parallel>, #tpu.dimension_semantics<arbitrary>], iteration_bounds = array<i64: 2, 1, 1>, scalar_prefetch = 0 : i64, scratch_operands = 4 : i64, tpu.core_type = #tpu.core_type<tc>, window_params = [{transform_indices = @transform_0, window_bounds = array<i64: 1, 8, 128>}, {transform_indices = @transform_1, window_bounds = array<i64: 1, 8, 128>}, {pipeline_mode = #tpu.pipeline_mode<synchronous>, transform_indices = @transform_2, window_bounds = array<i64: 128, 32>}, {pipeline_mode = #tpu.pipeline_mode<synchronous>, transform_indices = @transform_3, window_bounds = array<i64: 128, 32>}, {pipeline_mode = #tpu.pipeline_mode<synchronous>, transform_indices = @transform_4, window_bounds = array<i64: 128, 32>}, {transform_indices = @transform_5, window_bounds = array<i64: 8, 8>}, {transform_indices = @transform_6, window_bounds = array<i64: 1, 8, 32>}]} {
    %c0_i32 = arith.constant 0 : i32
    %0 = arith.cmpi eq, %arg2, %c0_i32 : i32
    %1 = arith.extui %0 : i1 to i32
    %c0_i32_0 = arith.constant 0 : i32
    %2 = arith.cmpi ne, %1, %c0_i32_0 : i32
    scf.if %2 {
      %c0_37 = arith.constant 0 : index
      %c0_38 = arith.constant 0 : index
      %c0_39 = arith.constant 0 : index
      %45 = vector.load %arg3[%c0_37, %c0_38, %c0_39] : memref<1x8x128xf32, #tpu.memory_space<vmem>>, vector<1x8x128xf32>
      %46 = arith.truncf %45 : vector<1x8x128xf32> to vector<1x8x128xbf16>
      %47 = vector.shape_cast %46 : vector<1x8x128xbf16> to vector<8x128xbf16>
      %c0_40 = arith.constant 0 : index
      %c0_41 = arith.constant 0 : index
      %48 = vector.load %arg5[%c0_40, %c0_41] : memref<128x32xbf16, #tpu.memory_space<vmem>>, vector<128x32xbf16>
      %cst_42 = arith.constant dense<0.000000e+00> : vector<8x32xf32>
      %49 = tpu.matmul %47, %48, %cst_42 {dimension_numbers = #tpu.dot_dimension_numbers<[1], [0], [0], [1], [0, 0, 1, 1], [], []>} : vector<8x128xbf16>, vector<128x32xbf16>, vector<8x32xf32> -> vector<8x32xf32>
      %50 = vector.shape_cast %49 : vector<8x32xf32> to vector<1x8x32xf32>
      %51 = arith.truncf %50 : vector<1x8x32xf32> to vector<1x8x32xbf16>
      %c0_43 = arith.constant 0 : index
      %c0_44 = arith.constant 0 : index
      %c0_45 = arith.constant 0 : index
      %52 = vector.load %arg10[%c0_43, %c0_44, %c0_45] : memref<1x8x32xbf16, #tpu.memory_space<vmem>>, vector<1x8x32xbf16>
      tpu.vector_store %arg10[%c0_43, %c0_44, %c0_45], %51 {strides = array<i32>} : memref<1x8x32xbf16, #tpu.memory_space<vmem>>, vector<1x8x32xbf16>,
      %cst_46 = arith.constant -2.38197633E+38 : f32
      %53 = vector.broadcast %cst_46 : f32 to vector<1x8x1xf32>
      %c0_47 = arith.constant 0 : index
      %c0_48 = arith.constant 0 : index
      %c0_49 = arith.constant 0 : index
      %54 = vector.load %arg11[%c0_47, %c0_48, %c0_49] : memref<1x8x1xf32, #tpu.memory_space<vmem>>, vector<1x8x1xf32>
      tpu.vector_store %arg11[%c0_47, %c0_48, %c0_49], %53 {strides = array<i32>} : memref<1x8x1xf32, #tpu.memory_space<vmem>>, vector<1x8x1xf32>,
      %cst_50 = arith.constant 0.000000e+00 : f32
      %55 = vector.broadcast %cst_50 : f32 to vector<1x8x1xf32>
      %c0_51 = arith.constant 0 : index
      %c0_52 = arith.constant 0 : index
      %c0_53 = arith.constant 0 : index
      %56 = vector.load %arg12[%c0_51, %c0_52, %c0_53] : memref<1x8x1xf32, #tpu.memory_space<vmem>>, vector<1x8x1xf32>
      tpu.vector_store %arg12[%c0_51, %c0_52, %c0_53], %55 {strides = array<i32>} : memref<1x8x1xf32, #tpu.memory_space<vmem>>, vector<1x8x1xf32>,
      %cst_54 = arith.constant 0.000000e+00 : f32
      %57 = vector.broadcast %cst_54 : f32 to vector<1x8x32xf32>
      %c0_55 = arith.constant 0 : index
      %c0_56 = arith.constant 0 : index
      %c0_57 = arith.constant 0 : index
      %58 = vector.load %arg13[%c0_55, %c0_56, %c0_57] : memref<1x8x32xf32, #tpu.memory_space<vmem>>, vector<1x8x32xf32>
      tpu.vector_store %arg13[%c0_55, %c0_56, %c0_57], %57 {strides = array<i32>} : memref<1x8x32xf32, #tpu.memory_space<vmem>>, vector<1x8x32xf32>,
    } else {
    }
    %c0 = arith.constant 0 : index
    %c0_1 = arith.constant 0 : index
    %c0_2 = arith.constant 0 : index
    %3 = vector.load %arg4[%c0, %c0_1, %c0_2] : memref<1x8x128xf32, #tpu.memory_space<vmem>>, vector<1x8x128xf32>
    %4 = arith.truncf %3 : vector<1x8x128xf32> to vector<1x8x128xbf16>
    %5 = vector.shape_cast %4 : vector<1x8x128xbf16> to vector<8x128xbf16>
    %c0_3 = arith.constant 0 : index
    %c0_4 = arith.constant 0 : index
    %6 = vector.load %arg6[%c0_3, %c0_4] : memref<128x32xbf16, #tpu.memory_space<vmem>>, vector<128x32xbf16>
    %cst = arith.constant dense<0.000000e+00> : vector<8x32xf32>
    %7 = tpu.matmul %5, %6, %cst {dimension_numbers = #tpu.dot_dimension_numbers<[1], [0], [0], [1], [0, 0, 1, 1], [], []>} : vector<8x128xbf16>, vector<128x32xbf16>, vector<8x32xf32> -> vector<8x32xf32>
    %c0_5 = arith.constant 0 : index
    %c0_6 = arith.constant 0 : index
    %8 = vector.load %arg7[%c0_5, %c0_6] : memref<128x32xbf16, #tpu.memory_space<vmem>>, vector<128x32xbf16>
    %cst_7 = arith.constant dense<0.000000e+00> : vector<8x32xf32>
    %9 = tpu.matmul %5, %8, %cst_7 {dimension_numbers = #tpu.dot_dimension_numbers<[1], [0], [0], [1], [0, 0, 1, 1], [], []>} : vector<8x128xbf16>, vector<128x32xbf16>, vector<8x32xf32> -> vector<8x32xf32>
    %10 = vector.shape_cast %7 : vector<8x32xf32> to vector<1x8x32xf32>
    %11 = arith.truncf %10 : vector<1x8x32xf32> to vector<1x8x32xbf16>
    %12 = vector.shape_cast %9 : vector<8x32xf32> to vector<1x8x32xf32>
    %13 = arith.truncf %12 : vector<1x8x32xf32> to vector<1x8x32xbf16>
    %c0_8 = arith.constant 0 : index
    %c0_9 = arith.constant 0 : index
    %c0_10 = arith.constant 0 : index
    %14 = vector.load %arg10[%c0_8, %c0_9, %c0_10] : memref<1x8x32xbf16, #tpu.memory_space<vmem>>, vector<1x8x32xbf16>
    "tpu.trace_start"() <{level = 10 : i32, message = "bqd,bkd->bqk"}> : () -> ()
    %cst_11 = arith.constant dense<0.000000e+00> : vector<1x8x8xf32>
    %15 = tpu.matmul %14, %11, %cst_11 {dimension_numbers = #tpu.dot_dimension_numbers<[2], [2], [1], [1], [0, 0, 0, 1, 1, 1], [0], [0]>} : vector<1x8x32xbf16>, vector<1x8x32xbf16>, vector<1x8x8xf32> -> vector<1x8x8xf32>
    "tpu.trace_stop"() : () -> ()
    %c0_12 = arith.constant 0 : index
    %c0_13 = arith.constant 0 : index
    %16 = vector.load %arg8[%c0_12, %c0_13] : memref<8x8xf32, #tpu.memory_space<vmem>>, vector<8x8xf32>
    %17 = vector.shape_cast %16 : vector<8x8xf32> to vector<1x8x8xf32>
    %18 = arith.addf %15, %17 : vector<1x8x8xf32>
    %c0_14 = arith.constant 0 : index
    %c0_15 = arith.constant 0 : index
    %c0_16 = arith.constant 0 : index
    %19 = vector.load %arg11[%c0_14, %c0_15, %c0_16] : memref<1x8x1xf32, #tpu.memory_space<vmem>>, vector<1x8x1xf32>
    %cst_17 = arith.constant dense<0xFF800000> : vector<1x8xf32>
    %20 = vector.multi_reduction <maximumf>, %18, %cst_17 [2] : vector<1x8x8xf32> to vector<1x8xf32>
    %21 = vector.shape_cast %20 : vector<1x8xf32> to vector<1x8x1xf32>
    %22 = arith.maximumf %19, %21 : vector<1x8x1xf32>
    %23 = arith.subf %19, %22 : vector<1x8x1xf32>
    %24 = math.exp %23 : vector<1x8x1xf32>
    %25 = vector.broadcast %22 : vector<1x8x1xf32> to vector<1x8x8xf32>
    %26 = arith.subf %18, %25 : vector<1x8x8xf32>
    %27 = math.exp %26 : vector<1x8x8xf32>
    %c0_18 = arith.constant 0 : index
    %c0_19 = arith.constant 0 : index
    %c0_20 = arith.constant 0 : index
    %28 = vector.load %arg12[%c0_18, %c0_19, %c0_20] : memref<1x8x1xf32, #tpu.memory_space<vmem>>, vector<1x8x1xf32>
    %29 = arith.mulf %24, %28 : vector<1x8x1xf32>
    %cst_21 = arith.constant dense<0.000000e+00> : vector<1x8xf32>
    %30 = vector.multi_reduction <add>, %27, %cst_21 [2] : vector<1x8x8xf32> to vector<1x8xf32>
    %31 = vector.shape_cast %30 : vector<1x8xf32> to vector<1x8x1xf32>
    %32 = arith.addf %29, %31 : vector<1x8x1xf32>
    %c0_22 = arith.constant 0 : index
    %c0_23 = arith.constant 0 : index
    %c0_24 = arith.constant 0 : index
    %33 = vector.load %arg12[%c0_22, %c0_23, %c0_24] : memref<1x8x1xf32, #tpu.memory_space<vmem>>, vector<1x8x1xf32>
    tpu.vector_store %arg12[%c0_22, %c0_23, %c0_24], %32 {strides = array<i32>} : memref<1x8x1xf32, #tpu.memory_space<vmem>>, vector<1x8x1xf32>,
    %c0_25 = arith.constant 0 : index
    %c0_26 = arith.constant 0 : index
    %c0_27 = arith.constant 0 : index
    %34 = vector.load %arg13[%c0_25, %c0_26, %c0_27] : memref<1x8x32xf32, #tpu.memory_space<vmem>>, vector<1x8x32xf32>
    %35 = vector.broadcast %24 : vector<1x8x1xf32> to vector<1x8x32xf32>
    %36 = arith.mulf %35, %34 : vector<1x8x32xf32>
    %37 = arith.truncf %27 : vector<1x8x8xf32> to vector<1x8x8xbf16>
    "tpu.trace_start"() <{level = 10 : i32, message = "bqk,bkd->bqd"}> : () -> ()
    %cst_28 = arith.constant dense<0.000000e+00> : vector<1x8x32xf32>
    %38 = tpu.matmul %37, %13, %cst_28 {dimension_numbers = #tpu.dot_dimension_numbers<[2], [1], [1], [2], [0, 0, 0, 1, 1, 2], [0], [0]>} : vector<1x8x8xbf16>, vector<1x8x32xbf16>, vector<1x8x32xf32> -> vector<1x8x32xf32>
    "tpu.trace_stop"() : () -> ()
    %39 = arith.addf %36, %38 : vector<1x8x32xf32>
    %c0_29 = arith.constant 0 : index
    %c0_30 = arith.constant 0 : index
    %c0_31 = arith.constant 0 : index
    %40 = vector.load %arg13[%c0_29, %c0_30, %c0_31] : memref<1x8x32xf32, #tpu.memory_space<vmem>>, vector<1x8x32xf32>
    tpu.vector_store %arg13[%c0_29, %c0_30, %c0_31], %39 {strides = array<i32>} : memref<1x8x32xf32, #tpu.memory_space<vmem>>, vector<1x8x32xf32>,
    %c0_32 = arith.constant 0 : index
    %c0_33 = arith.constant 0 : index
    %c0_34 = arith.constant 0 : index
    %41 = vector.load %arg11[%c0_32, %c0_33, %c0_34] : memref<1x8x1xf32, #tpu.memory_space<vmem>>, vector<1x8x1xf32>
    tpu.vector_store %arg11[%c0_32, %c0_33, %c0_34], %22 {strides = array<i32>} : memref<1x8x1xf32, #tpu.memory_space<vmem>>, vector<1x8x1xf32>,
    %c0_i32_35 = arith.constant 0 : i32
    %42 = arith.cmpi eq, %arg2, %c0_i32_35 : i32
    %43 = arith.extui %42 : i1 to i32
    %c0_i32_36 = arith.constant 0 : i32
    %44 = arith.cmpi ne, %43, %c0_i32_36 : i32
    scf.if %44 {
      %c0_37 = arith.constant 0 : index
      %c0_38 = arith.constant 0 : index
      %c0_39 = arith.constant 0 : index
      %45 = vector.load %arg12[%c0_37, %c0_38, %c0_39] : memref<1x8x1xf32, #tpu.memory_space<vmem>>, vector<1x8x1xf32>
      %46 = tpu.reciprocal %45 {approx = true} : vector<1x8x1xf32> -> vector<1x8x1xf32>
      %c0_40 = arith.constant 0 : index
      %c0_41 = arith.constant 0 : index
      %c0_42 = arith.constant 0 : index
      %47 = vector.load %arg13[%c0_40, %c0_41, %c0_42] : memref<1x8x32xf32, #tpu.memory_space<vmem>>, vector<1x8x32xf32>
      %48 = vector.broadcast %46 : vector<1x8x1xf32> to vector<1x8x32xf32>
      %49 = arith.mulf %47, %48 : vector<1x8x32xf32>
      %c0_43 = arith.constant 0 : index
      %c0_44 = arith.constant 0 : index
      %c0_45 = arith.constant 0 : index
      %50 = vector.load %arg9[%c0_43, %c0_44, %c0_45] : memref<1x8x32xf32, #tpu.memory_space<vmem>>, vector<1x8x32xf32>
      tpu.vector_store %arg9[%c0_43, %c0_44, %c0_45], %49 {strides = array<i32>} : memref<1x8x32xf32, #tpu.memory_space<vmem>>, vector<1x8x32xf32>,
    } else {
    }
    return
  }
  func.func @transform_0(%arg0: i32, %arg1: i32, %arg2: i32) -> (i32, i32, i32) {
    %c0_i32 = arith.constant 0 : i32
    %c0_i32_0 = arith.constant 0 : i32
    return %arg0, %arg1, %c0_i32 : i32, i32, i32
  }
  func.func @transform_1(%arg0: i32, %arg1: i32, %arg2: i32) -> (i32, i32, i32) {
    %c0_i32 = arith.constant 0 : i32
    %c0_i32_0 = arith.constant 0 : i32
    return %arg0, %arg2, %c0_i32 : i32, i32, i32
  }
  func.func @transform_2(%arg0: i32, %arg1: i32, %arg2: i32) -> (i32, i32) {
    %c0_i32 = arith.constant 0 : i32
    %c0_i32_0 = arith.constant 0 : i32
    %c0_i32_1 = arith.constant 0 : i32
    return %c0_i32, %c0_i32_0 : i32, i32
  }
  func.func @transform_3(%arg0: i32, %arg1: i32, %arg2: i32) -> (i32, i32) {
    %c0_i32 = arith.constant 0 : i32
    %c0_i32_0 = arith.constant 0 : i32
    %c0_i32_1 = arith.constant 0 : i32
    return %c0_i32, %c0_i32_0 : i32, i32
  }
  func.func @transform_4(%arg0: i32, %arg1: i32, %arg2: i32) -> (i32, i32) {
    %c0_i32 = arith.constant 0 : i32
    %c0_i32_0 = arith.constant 0 : i32
    %c0_i32_1 = arith.constant 0 : i32
    return %c0_i32, %c0_i32_0 : i32, i32
  }
  func.func @transform_5(%arg0: i32, %arg1: i32, %arg2: i32) -> (i32, i32) {
    %c0_i32 = arith.constant 0 : i32
    return %arg1, %arg2 : i32, i32
  }
  func.func @transform_6(%arg0: i32, %arg1: i32, %arg2: i32) -> (i32, i32, i32) {
    %c0_i32 = arith.constant 0 : i32
    %c0_i32_0 = arith.constant 0 : i32
    return %arg0, %arg1, %c0_i32 : i32, i32, i32
  }
}

</mosaic_0001>

<llo_original>
// kernel: tpu_custom_call.1
$region0: #{tpu_custom_call.1}
  #allocation0 [shape = 'u32[]', space=smem, size = 0x4, offset = 0x4, fixed_abs, tag = 'smem constant byte address 0x4 - core index']
  #allocation1 [shape = 'u32[144,128]{1,0:T(1,128)}', space=vmem, size = 0x12000, scoped, tag = 'internal scratch']
  #allocation2 [shape = 'bf16[1,8,32]{2,1,0:T(8,128)(2,1)}', space=vmem, size = 0x800, scoped, tag = 'scratch operand']
  #allocation3 [shape = 'f32[1,8,1]{2,1,0:T(8,128)}', space=vmem, size = 0x1000, scoped, tag = 'scratch operand']
  #allocation4 [shape = 'f32[1,8,1]{2,1,0:T(8,128)}', space=vmem, size = 0x1000, scoped, tag = 'scratch operand']
  #allocation5 [shape = 'f32[1,8,32]{2,1,0:T(8,128)}', space=vmem, size = 0x1000, scoped, tag = 'scratch operand']
  %s0 = inlined_call_operand.vmem [shape: f32[2,8,128], index: 0, kind: input, shape index: {}]
  %s1 = inlined_call_operand.vmem [shape: f32[2,8,128], index: 1, kind: input, shape index: {}]
  %s2 = inlined_call_operand.vmem [shape: bf16[128,32], index: 2, kind: input, shape index: {}]
  %s3 = inlined_call_operand.vmem [shape: bf16[128,32], index: 3, kind: input, shape index: {}]
  %s4 = inlined_call_operand.vmem [shape: bf16[128,32], index: 4, kind: input, shape index: {}]
  %s5 = inlined_call_operand.vmem [shape: f32[8,8], index: 5, kind: input, shape index: {}]
  %s6 = inlined_call_operand.hbm [shape: f32[2,8,32], index: 6, kind: output, shape index: {}]
  %s7 = sld [smem:[#allocation0]]
  $region65: #{tpu_custom_call.1} parent=0
    _
  %s9 = ssub.s32 1, %s7
  %s10 = scalar_select 0, %s9, %s7
  $region1: #{tpu_custom_call.1} parent=0
    #allocation6 [shape = 'u8[8192]{0}', space=vmem, size = 0x2000, scoped, tag = 'output window, operand 0']
    #allocation7 [shape = 's32[2]{0}', space=sflag, size = 0x8, scoped, tag = 'scoped memory for tpu_custom_call.1']
    %11 = vsyncpa [#allocation7], 0
    %s12 = scalar_lea.sflag [#allocation7], 1
    %13 = vsyncpa %s12, 0
    loop: start=0, step=1, limit=4
    $region2: #{tpu_custom_call.1} parent=1 // loop_pre_header
      _
    $region3: #{tpu_custom_call.1} parent=1 // loop_header
      %s15 = sphi 0, %s19
      %p16 = scmp.ge.s32.totalorder %s15, 4
      %s22 = sphi 0, %s41
      %s23 = sphi 0, %s37
      %s24 = sphi 0, %s33
      %s25 = sphi 0, %s22
      %s26 = sphi 0, %s23
      %s27 = sphi 0, %s24
      %s28 = sphi 0, %s25
      %s29 = sphi 0, %s26
      %s30 = sphi 0, %s27
      %s46 = sphi 0, %s48
      %s49 = sphi 0, %s46
      %s50 = sphi 0, %s49
      %s66 = sphi 0, %s50
      %s74 = sphi 0, %s76
      %s77 = sphi 0, %s74
      %s78 = sphi 0, %s77
      %s94 = sphi 0, %s78
      %s98 = sphi 0, %s98
      %s100 = sphi 0, %s98
      %s101 = sphi 0, %s100
      %s115 = sphi 0, %s101
      %s119 = sphi 0, %s119
      %s121 = sphi 0, %s119
      %s122 = sphi 0, %s121
      %s136 = sphi 0, %s122
      %s140 = sphi 0, %s140
      %s142 = sphi 0, %s140
      %s143 = sphi 0, %s142
      %s157 = sphi 0, %s143
      %s165 = sphi 0, %s167
      %s168 = sphi 0, %s165
      %s169 = sphi 0, %s168
      %s185 = sphi 0, %s169
      %s193 = sphi 0, %s195
      %s196 = sphi 0, %s193
      %s197 = sphi 0, %s196
      %s213 = sphi 0, %s197
    $region4: #{tpu_custom_call.1} parent=1 // loop_header_branch
      %18 = sbr.rel (%p16) target = $region8
    $region5: #{tpu_custom_call.1} parent=1 // loop_body
      %s20 = ssub.s32 %s15, 1
      %s21 = ssub.s32 %s15, 2
      %s31 = sadd.s32 1, %s24
      %p32 = scmp.ge.s32.totalorder %s31, 1
      %s33 = scalar_select %p32, 0, %s31
      %s34 = sadd.s32 1, %s23
      %s35 = scalar_select %p32, %s34, %s23
      %p36 = scmp.ge.s32.totalorder %s35, 1
      %s37 = scalar_select %p36, 0, %s35
      %s38 = sadd.s32 1, %s22
      %s39 = scalar_select %p36, %s38, %s22
      %p40 = scmp.ge.s32.totalorder %s39, 2
      %s41 = scalar_select %p40, 0, %s39
      %s42 = ssub.s32 %s22, %s41
      %s43 = ssub.s32 %s23, %s37
      %s44 = sor.u32 %s42, %s43
      %p45 = scmp.eq.s32.totalorder %s44, 0
      %s47 = sadd.s32 %s46, 1
      %s48 = scalar_select %p45, %s46, %s47
      %p51 = pneg %p45
      %p52 = scmp.eq.s32.totalorder %s15, 1
      %p53 = por %p51, %p52
      %p54 = scmp.ne.s32.totalorder %s46, %s49
      %p55 = scmp.eq.s32.totalorder %s15, 0
      %p56 = por %p54, %p55
      %p57 = scmp.ne.s32.totalorder %s46, %s49
      %p58 = scmp.eq.s32.totalorder %s20, 1
      %p59 = por %p57, %p58
      %p60 = scmp.ne.s32.totalorder %s49, %s50
      %p61 = scmp.eq.s32.totalorder %s20, 0
      %p62 = por %p60, %p61
      %p63 = scmp.ne.s32.totalorder %s49, %s50
      %p64 = scmp.eq.s32.totalorder %s21, 1
      %p65 = por %p63, %p64
      %p67 = scmp.ne.s32.totalorder %s50, %s66
      %p68 = scmp.eq.s32.totalorder %s21, 0
      %p69 = por %p67, %p68
      %s70 = ssub.s32 %s22, %s41
      %s71 = ssub.s32 %s24, %s33
      %s72 = sor.u32 %s70, %s71
      %p73 = scmp.eq.s32.totalorder %s72, 0
      %s75 = sadd.s32 %s74, 1
      %s76 = scalar_select %p73, %s74, %s75
      %p79 = pneg %p73
      %p80 = scmp.eq.s32.totalorder %s15, 1
      %p81 = por %p79, %p80
      %p82 = scmp.ne.s32.totalorder %s74, %s77
      %p83 = scmp.eq.s32.totalorder %s15, 0
      %p84 = por %p82, %p83
      %p85 = scmp.ne.s32.totalorder %s74, %s77
      %p86 = scmp.eq.s32.totalorder %s20, 1
      %p87 = por %p85, %p86
      %p88 = scmp.ne.s32.totalorder %s77, %s78
      %p89 = scmp.eq.s32.totalorder %s20, 0
      %p90 = por %p88, %p89
      %p91 = scmp.ne.s32.totalorder %s77, %s78
      %p92 = scmp.eq.s32.totalorder %s21, 1
      %p93 = por %p91, %p92
      %p95 = scmp.ne.s32.totalorder %s78, %s94
      %p96 = scmp.eq.s32.totalorder %s21, 0
      %p97 = por %p95, %p96
      %s99 = sadd.s32 %s98, 1
      %p102 = scmp.eq.s32.totalorder %s15, 1
      %p103 = scmp.ne.s32.totalorder %s98, %s100
      %p104 = scmp.eq.s32.totalorder %s15, 0
      %p105 = por %p103, %p104
      %p106 = scmp.ne.s32.totalorder %s98, %s100
      %p107 = scmp.eq.s32.totalorder %s20, 1
      %p108 = por %p106, %p107
      %p109 = scmp.ne.s32.totalorder %s100, %s101
      %p110 = scmp.eq.s32.totalorder %s20, 0
      %p111 = por %p109, %p110
      %p112 = scmp.ne.s32.totalorder %s100, %s101
      %p113 = scmp.eq.s32.totalorder %s21, 1
      %p114 = por %p112, %p113
      %p116 = scmp.ne.s32.totalorder %s101, %s115
      %p117 = scmp.eq.s32.totalorder %s21, 0
      %p118 = por %p116, %p117
      %s120 = sadd.s32 %s119, 1
      %p123 = scmp.eq.s32.totalorder %s15, 1
      %p124 = scmp.ne.s32.totalorder %s119, %s121
      %p125 = scmp.eq.s32.totalorder %s15, 0
      %p126 = por %p124, %p125
      %p127 = scmp.ne.s32.totalorder %s119, %s121
      %p128 = scmp.eq.s32.totalorder %s20, 1
      %p129 = por %p127, %p128
      %p130 = scmp.ne.s32.totalorder %s121, %s122
      %p131 = scmp.eq.s32.totalorder %s20, 0
      %p132 = por %p130, %p131
      %p133 = scmp.ne.s32.totalorder %s121, %s122
      %p134 = scmp.eq.s32.totalorder %s21, 1
      %p135 = por %p133, %p134
      %p137 = scmp.ne.s32.totalorder %s122, %s136
      %p138 = scmp.eq.s32.totalorder %s21, 0
      %p139 = por %p137, %p138
      %s141 = sadd.s32 %s140, 1
      %p144 = scmp.eq.s32.totalorder %s15, 1
      %p145 = scmp.ne.s32.totalorder %s140, %s142
      %p146 = scmp.eq.s32.totalorder %s15, 0
      %p147 = por %p145, %p146
      %p148 = scmp.ne.s32.totalorder %s140, %s142
      %p149 = scmp.eq.s32.totalorder %s20, 1
      %p150 = por %p148, %p149
      %p151 = scmp.ne.s32.totalorder %s142, %s143
      %p152 = scmp.eq.s32.totalorder %s20, 0
      %p153 = por %p151, %p152
      %p154 = scmp.ne.s32.totalorder %s142, %s143
      %p155 = scmp.eq.s32.totalorder %s21, 1
      %p156 = por %p154, %p155
      %p158 = scmp.ne.s32.totalorder %s143, %s157
      %p159 = scmp.eq.s32.totalorder %s21, 0
      %p160 = por %p158, %p159
      %s161 = ssub.s32 %s23, %s37
      %s162 = ssub.s32 %s24, %s33
      %s163 = sor.u32 %s161, %s162
      %p164 = scmp.eq.s32.totalorder %s163, 0
      %s166 = sadd.s32 %s165, 1
      %s167 = scalar_select %p164, %s165, %s166
      %p170 = pneg %p164
      %p171 = scmp.eq.s32.totalorder %s15, 1
      %p172 = por %p170, %p171
      %p173 = scmp.ne.s32.totalorder %s165, %s168
      %p174 = scmp.eq.s32.totalorder %s15, 0
      %p175 = por %p173, %p174
      %p176 = scmp.ne.s32.totalorder %s165, %s168
      %p177 = scmp.eq.s32.totalorder %s20, 1
      %p178 = por %p176, %p177
      %p179 = scmp.ne.s32.totalorder %s168, %s169
      %p180 = scmp.eq.s32.totalorder %s20, 0
      %p181 = por %p179, %p180
      %p182 = scmp.ne.s32.totalorder %s168, %s169
      %p183 = scmp.eq.s32.totalorder %s21, 1
      %p184 = por %p182, %p183
      %p186 = scmp.ne.s32.totalorder %s169, %s185
      %p187 = scmp.eq.s32.totalorder %s21, 0
      %p188 = por %p186, %p187
      %s189 = ssub.s32 %s22, %s41
      %s190 = ssub.s32 %s23, %s37
      %s191 = sor.u32 %s189, %s190
      %p192 = scmp.eq.s32.totalorder %s191, 0
      %s194 = sadd.s32 %s193, 1
      %s195 = scalar_select %p192, %s193, %s194
      %p198 = pneg %p192
      %p199 = scmp.eq.s32.totalorder %s15, 1
      %p200 = por %p198, %p199
      %p201 = scmp.ne.s32.totalorder %s193, %s196
      %p202 = scmp.eq.s32.totalorder %s15, 0
      %p203 = por %p201, %p202
      %p204 = scmp.ne.s32.totalorder %s193, %s196
      %p205 = scmp.eq.s32.totalorder %s20, 1
      %p206 = por %p204, %p205
      %p207 = scmp.ne.s32.totalorder %s196, %s197
      %p208 = scmp.eq.s32.totalorder %s20, 0
      %p209 = por %p207, %p208
      %p210 = scmp.ne.s32.totalorder %s196, %s197
      %p211 = scmp.eq.s32.totalorder %s21, 1
      %p212 = por %p210, %p211
      %p214 = scmp.ne.s32.totalorder %s197, %s213
      %p215 = scmp.eq.s32.totalorder %s21, 0
      %p216 = por %p214, %p215
      %p217 = scmp.le.s32.totalorder 1, %s15
      %p218 = scmp.lt.s32.totalorder %s15, 3
      %p219 = pnand %p217, %p218
      %p220 = pneg %p219
      // Predicated region
      $region9: #{tpu_custom_call.1} parent=5 // pred_check
        _
      $region10: #{tpu_custom_call.1} parent=5 // pred_check_branch
        %222 = sbr.rel (%p219) target = $region12
      $region11: #{tpu_custom_call.1} parent=5 // pred_region
        %s223 = ssub.s32 %s15, 1
        // Predicated region
        $region13: #{tpu_custom_call.1} parent=11 // pred_check
          %p224 = pneg %p111
        $region14: #{tpu_custom_call.1} parent=11 // pred_check_branch
          %226 = sbr.rel (%p224) target = $region16
        $region15: #{tpu_custom_call.1} parent=11 // pred_region
          _
        $region16: #{tpu_custom_call.1} parent=11 // pred_fallthru
          _
        // Predicated region
        $region17: #{tpu_custom_call.1} parent=11 // pred_check
          %p227 = pneg %p132
        $region18: #{tpu_custom_call.1} parent=11 // pred_check_branch
          %229 = sbr.rel (%p227) target = $region20
        $region19: #{tpu_custom_call.1} parent=11 // pred_region
          _
        $region20: #{tpu_custom_call.1} parent=11 // pred_fallthru
          _
        // Predicated region
        $region21: #{tpu_custom_call.1} parent=11 // pred_check
          %p230 = pneg %p153
        $region22: #{tpu_custom_call.1} parent=11 // pred_check_branch
          %232 = sbr.rel (%p230) target = $region24
        $region23: #{tpu_custom_call.1} parent=11 // pred_region
          _
        $region24: #{tpu_custom_call.1} parent=11 // pred_fallthru
          _
        // Predicated region
        $region25: #{tpu_custom_call.1} parent=11 // pred_check
          %p233 = pneg %p181
        $region26: #{tpu_custom_call.1} parent=11 // pred_check_branch
          %235 = sbr.rel (%p233) target = $region28
        $region27: #{tpu_custom_call.1} parent=11 // pred_region
          %p236 = scmp.lt.s32.totalorder %s26, 0
          %s237 = scalar_select %p236, %s26, 0
          %p238 = scmp.lt.s32.totalorder %s27, 0
          %s239 = scalar_select %p238, %s27, 0
          %s240 = sadd.s32 %s239, %s237
          %s241 = smul.addr %s240, 8
          %s242 = scalar_lea.vmem %s5, %s241
        $region28: #{tpu_custom_call.1} parent=11 // pred_fallthru
          _
      $region12: #{tpu_custom_call.1} parent=5 // pred_fallthru
        _
      %p243 = scmp.lt.s32.totalorder %s15, 2
      // Predicated region
      $region29: #{tpu_custom_call.1} parent=5 // pred_check
        %p244 = pneg %p243
      $region30: #{tpu_custom_call.1} parent=5 // pred_check_branch
        %246 = sbr.rel (%p244) target = $region32
      $region31: #{tpu_custom_call.1} parent=5 // pred_region
        // Predicated region
        $region33: #{tpu_custom_call.1} parent=31 // pred_check
          %p247 = pneg %p56
        $region34: #{tpu_custom_call.1} parent=31 // pred_check_branch
          %249 = sbr.rel (%p247) target = $region36
        $region35: #{tpu_custom_call.1} parent=31 // pred_region
          %p250 = scmp.lt.s32.totalorder %s22, 1
          %s251 = scalar_select %p250, %s22, 1
          %p252 = scmp.lt.s32.totalorder %s23, 0
          %s253 = scalar_select %p252, %s23, 0
          %s254 = sadd.s32 %s253, %s251
          %s255 = smul.addr %s254, 8
          %s256 = scalar_lea.vmem %s0, %s255
        $region36: #{tpu_custom_call.1} parent=31 // pred_fallthru
          _
        // Predicated region
        $region37: #{tpu_custom_call.1} parent=31 // pred_check
          %p257 = pneg %p84
        $region38: #{tpu_custom_call.1} parent=31 // pred_check_branch
          %259 = sbr.rel (%p257) target = $region40
        $region39: #{tpu_custom_call.1} parent=31 // pred_region
          %p260 = scmp.lt.s32.totalorder %s22, 1
          %s261 = scalar_select %p260, %s22, 1
          %p262 = scmp.lt.s32.totalorder %s24, 0
          %s263 = scalar_select %p262, %s24, 0
          %s264 = sadd.s32 %s263, %s261
          %s265 = smul.addr %s264, 8
          %s266 = scalar_lea.vmem %s1, %s265
        $region40: #{tpu_custom_call.1} parent=31 // pred_fallthru
          _
      $region32: #{tpu_custom_call.1} parent=5 // pred_fallthru
        _
      %p267 = scmp.le.s32.totalorder 1, %s15
      %p268 = scmp.lt.s32.totalorder %s15, 3
      %p269 = pnand %p267, %p268
      %p270 = pneg %p269
      // Predicated region
      $region41: #{tpu_custom_call.1} parent=5 // pred_check
        _
      $region42: #{tpu_custom_call.1} parent=5 // pred_check_branch
        %272 = sbr.rel (%p269) target = $region44
      $region43: #{tpu_custom_call.1} parent=5 // pred_region
        %s273 = ssub.s32 %s15, 1
        %p274 = scmp.lt.s32.totalorder %s25, 1
        %s275 = scalar_select %p274, %s25, 1
        %p276 = scmp.lt.s32.totalorder %s26, 0
        %s277 = scalar_select %p276, %s26, 0
        %s278 = sadd.s32 %s277, %s275
        %s279 = smul.addr %s278, 8
        %s280 = scalar_lea.vmem %s0, %s279
        %p281 = pneg %p62
        %p282 = pneg %p59
        %p283 = scmp.lt.s32.totalorder %s25, 1
        %s284 = scalar_select %p283, %s25, 1
        %p285 = scmp.lt.s32.totalorder %s27, 0
        %s286 = scalar_select %p285, %s27, 0
        %s287 = sadd.s32 %s286, %s284
        %s288 = smul.addr %s287, 8
        %s289 = scalar_lea.vmem %s1, %s288
        %p290 = pneg %p90
        %p291 = pneg %p87
        %p292 = pneg %p111
        %p293 = pneg %p108
        %p294 = pneg %p132
        %p295 = pneg %p129
        %p296 = pneg %p153
        %p297 = pneg %p150
        %p298 = scmp.lt.s32.totalorder %s26, 0
        %s299 = scalar_select %p298, %s26, 0
        %p300 = scmp.lt.s32.totalorder %s27, 0
        %s301 = scalar_select %p300, %s27, 0
        %s302 = sadd.s32 %s301, %s299
        %s303 = smul.addr %s302, 8
        %s304 = scalar_lea.vmem %s5, %s303
        %p305 = pneg %p181
        %p306 = pneg %p178
        %p307 = pneg %p209
        %p308 = pneg %p206
        %s309 = sand.u32 %s196, 1
        %s310 = scalar_lea.sflag [#allocation7], %s309
        %s311 = sand.u32 %s196, 1
        %s312 = smul.addr %s311, 8
        %s313 = scalar_lea.vmem [#allocation6], %s312
        %p314 = scmp.lt.s32.totalorder %s25, 1
        %s315 = scalar_select %p314, %s25, 1
        %p316 = scmp.lt.s32.totalorder %s26, 0
        %s317 = scalar_select %p316, %s26, 0
        %s318 = sadd.s32 %s317, %s315
        %s319 = smul.addr %s318, 8
        %s320 = scalar_lea.vmem %s0, %s319
        %p321 = scmp.lt.s32.totalorder %s25, 1
        %s322 = scalar_select %p321, %s25, 1
        %p323 = scmp.lt.s32.totalorder %s27, 0
        %s324 = scalar_select %p323, %s27, 0
        %s325 = sadd.s32 %s324, %s322
        %s326 = smul.addr %s325, 8
        %s327 = scalar_lea.vmem %s1, %s326
        %p328 = scmp.lt.s32.totalorder %s26, 0
        %s329 = scalar_select %p328, %s26, 0
        %p330 = scmp.lt.s32.totalorder %s27, 0
        %s331 = scalar_select %p330, %s27, 0
        %s332 = sadd.s32 %s331, %s329
        %s333 = smul.addr %s332, 8
        %s334 = scalar_lea.vmem %s5, %s333
        %p336 = scmp.eq.s32.totalorder %s27, 0
        // Predicated region
        $region45: #{tpu_custom_call.1} parent=43 // pred_check
          %p337 = pneg %p336
        $region46: #{tpu_custom_call.1} parent=43 // pred_check_branch
          %339 = sbr.rel (%p337) target = $region48
        $region47: #{tpu_custom_call.1} parent=43 // pred_region
          %v340 = vld [vmem:[%s320] sm:$0xff]
          %v341 = vpack.c.bf16 %v340, %v340
          %v342 = vld [vmem:[%s2] sm:$0xf]
          %v343 = vld [vmem:[%s2 + $0x4] sm:$0xf]
          %v344 = vld [vmem:[%s2 + $0x8] sm:$0xf]
          %v345 = vld [vmem:[%s2 + $0xc] sm:$0xf]
          %v346 = vld [vmem:[%s2 + $0x10] sm:$0xf]
          %v347 = vld [vmem:[%s2 + $0x14] sm:$0xf]
          %v348 = vld [vmem:[%s2 + $0x18] sm:$0xf]
          %v349 = vld [vmem:[%s2 + $0x1c] sm:$0xf]
          %v350 = vld [vmem:[%s2 + $0x20] sm:$0xf]
          %v351 = vld [vmem:[%s2 + $0x24] sm:$0xf]
          %v352 = vld [vmem:[%s2 + $0x28] sm:$0xf]
          %v353 = vld [vmem:[%s2 + $0x2c] sm:$0xf]
          %v354 = vld [vmem:[%s2 + $0x30] sm:$0xf]
          %v355 = vld [vmem:[%s2 + $0x34] sm:$0xf]
          %v356 = vld [vmem:[%s2 + $0x38] sm:$0xf]
          %v357 = vld [vmem:[%s2 + $0x3c] sm:$0xf]
          %v374 = vunpack.c.l.b16 %v342
          %v375 = vunpack.c.l.b16 %v343
          %v376 = vunpack.c.l.b16 %v344
          %v377 = vunpack.c.l.b16 %v345
          %v378 = vunpack.c.l.b16 %v346
          %v379 = vunpack.c.l.b16 %v347
          %v380 = vunpack.c.l.b16 %v348
          %v381 = vunpack.c.l.b16 %v349
          %v382 = vunpack.c.l.b16 %v350
          %v383 = vunpack.c.l.b16 %v351
          %v384 = vunpack.c.l.b16 %v352
          %v385 = vunpack.c.l.b16 %v353
          %v386 = vunpack.c.l.b16 %v354
          %v387 = vunpack.c.l.b16 %v355
          %v388 = vunpack.c.l.b16 %v356
          %v389 = vunpack.c.l.b16 %v357
          %v390 = vpack.c.b16 %v375, %v374
          %v391 = vpack.c.b16 %v377, %v376
          %v392 = vpack.c.b16 %v379, %v378
          %v393 = vpack.c.b16 %v381, %v380
          %v394 = vpack.c.b16 %v383, %v382
          %v395 = vpack.c.b16 %v385, %v384
          %v396 = vpack.c.b16 %v387, %v386
          %v397 = vpack.c.b16 %v389, %v388
          %406 = vmatprep.subr.bf16.mxu0 0
          %407 = vmatpush1.bf16.msra.mxu0 %v390
          %408 = vmatprep.subr.bf16.mxu0 0
          %409 = vmatpush1.bf16.msra.mxu0 %v391
          %410 = vmatprep.subr.bf16.mxu0 0
          %411 = vmatpush1.bf16.msra.mxu0 %v392
          %412 = vmatprep.subr.bf16.mxu0 0
          %413 = vmatpush1.bf16.msra.mxu0 %v393
          %414 = vmatprep.subr.bf16.mxu0 0
          %415 = vmatpush1.bf16.msra.mxu0 %v394
          %416 = vmatprep.subr.bf16.mxu0 0
          %417 = vmatpush1.bf16.msra.mxu0 %v395
          %418 = vmatprep.subr.bf16.mxu0 0
          %419 = vmatpush1.bf16.msra.mxu0 %v396
          %420 = vmatprep.subr.bf16.mxu0 0
          %421 = vmatpush1.bf16.msra.mxu0 %v397
          %422 = vmatprep.subr.bf16.mxu0 0
          %423 = vmatpush1.bf16.msra.mxu0 0
          %424 = vmatprep.subr.bf16.mxu0 0
          %425 = vmatpush1.bf16.msra.mxu0 0
          %426 = vmatprep.subr.bf16.mxu0 0
          %427 = vmatpush1.bf16.msra.mxu0 0
          %428 = vmatprep.subr.bf16.mxu0 0
          %429 = vmatpush1.bf16.msra.mxu0 0
          %430 = vmatprep.subr.bf16.mxu0 0
          %431 = vmatpush1.bf16.msra.mxu0 0
          %432 = vmatprep.subr.bf16.mxu0 0
          %433 = vmatpush1.bf16.msra.mxu0 0
          %434 = vmatprep.subr.bf16.mxu0 0
          %435 = vmatpush1.bf16.msra.mxu0 0
          %436 = vmatprep.subr.bf16.mxu0 0
          %437 = vmatpush1.bf16.msra.mxu0 0
          %438 = vmatprep.mubr.bf16.mxu0 0
          %439 = vmatmul.mubr.bf16.gmra.mrb[0].mxu0 %v341
          %v440 = vpop.f32.mrb[0].mxu0
          %v441 = vadd.f32 0.0, %v440
          %v442 = vpop.f32.mrb[0].mxu0
          %v443 = vpop.f32.mrb[0].mxu0
          %v444 = vpop.f32.mrb[0].mxu0
          %445 = vdwg.mxu0
          %v446 = vpack.c.bf16 %v441, %v441
          %vm447 = vcmask 257024
          %448 = vst.msk [vmem:[#allocation2] sm:$0xf] %vm447, %v446
          %vm449 = vcmask 7168
          %450 = vst.msk [vmem:[#allocation3] sm:$0xff] %vm449, -2.3819763e+38
          %451 = vst.msk [vmem:[#allocation4] sm:$0xff] %vm449, 0.0
          %vm452 = vcmask 261120
          %453 = vst.msk [vmem:[#allocation5] sm:$0xff] %vm452, 0.0
        $region48: #{tpu_custom_call.1} parent=43 // pred_fallthru
          _
        %v454 = vld [vmem:[%s327] sm:$0xff]
        %v455 = vpack.c.bf16 %v454, %v454
        %v456 = vld [vmem:[%s3] sm:$0xf]
        %v457 = vld [vmem:[%s3 + $0x4] sm:$0xf]
        %v458 = vld [vmem:[%s3 + $0x8] sm:$0xf]
        %v459 = vld [vmem:[%s3 + $0xc] sm:$0xf]
        %v460 = vld [vmem:[%s3 + $0x10] sm:$0xf]
        %v461 = vld [vmem:[%s3 + $0x14] sm:$0xf]
        %v462 = vld [vmem:[%s3 + $0x18] sm:$0xf]
        %v463 = vld [vmem:[%s3 + $0x1c] sm:$0xf]
        %v464 = vld [vmem:[%s3 + $0x20] sm:$0xf]
        %v465 = vld [vmem:[%s3 + $0x24] sm:$0xf]
        %v466 = vld [vmem:[%s3 + $0x28] sm:$0xf]
        %v467 = vld [vmem:[%s3 + $0x2c] sm:$0xf]
        %v468 = vld [vmem:[%s3 + $0x30] sm:$0xf]
        %v469 = vld [vmem:[%s3 + $0x34] sm:$0xf]
        %v470 = vld [vmem:[%s3 + $0x38] sm:$0xf]
        %v471 = vld [vmem:[%s3 + $0x3c] sm:$0xf]
        %v488 = vunpack.c.l.b16 %v456
        %v489 = vunpack.c.l.b16 %v457
        %v490 = vunpack.c.l.b16 %v458
        %v491 = vunpack.c.l.b16 %v459
        %v492 = vunpack.c.l.b16 %v460
        %v493 = vunpack.c.l.b16 %v461
        %v494 = vunpack.c.l.b16 %v462
        %v495 = vunpack.c.l.b16 %v463
        %v496 = vunpack.c.l.b16 %v464
        %v497 = vunpack.c.l.b16 %v465
        %v498 = vunpack.c.l.b16 %v466
        %v499 = vunpack.c.l.b16 %v467
        %v500 = vunpack.c.l.b16 %v468
        %v501 = vunpack.c.l.b16 %v469
        %v502 = vunpack.c.l.b16 %v470
        %v503 = vunpack.c.l.b16 %v471
        %v504 = vpack.c.b16 %v489, %v488
        %v505 = vpack.c.b16 %v491, %v490
        %v506 = vpack.c.b16 %v493, %v492
        %v507 = vpack.c.b16 %v495, %v494
        %v508 = vpack.c.b16 %v497, %v496
        %v509 = vpack.c.b16 %v499, %v498
        %v510 = vpack.c.b16 %v501, %v500
        %v511 = vpack.c.b16 %v503, %v502
        %520 = vmatprep.subr.bf16.mxu0 0
        %521 = vmatpush1.bf16.msra.mxu0 %v504
        %522 = vmatprep.subr.bf16.mxu0 0
        %523 = vmatpush1.bf16.msra.mxu0 %v505
        %524 = vmatprep.subr.bf16.mxu0 0
        %525 = vmatpush1.bf16.msra.mxu0 %v506
        %526 = vmatprep.subr.bf16.mxu0 0
        %527 = vmatpush1.bf16.msra.mxu0 %v507
        %528 = vmatprep.subr.bf16.mxu0 0
        %529 = vmatpush1.bf16.msra.mxu0 %v508
        %530 = vmatprep.subr.bf16.mxu0 0
        %531 = vmatpush1.bf16.msra.mxu0 %v509
        %532 = vmatprep.subr.bf16.mxu0 0
        %533 = vmatpush1.bf16.msra.mxu0 %v510
        %534 = vmatprep.subr.bf16.mxu0 0
        %535 = vmatpush1.bf16.msra.mxu0 %v511
        %536 = vmatprep.subr.bf16.mxu0 0
        %537 = vmatpush1.bf16.msra.mxu0 0
        %538 = vmatprep.subr.bf16.mxu0 0
        %539 = vmatpush1.bf16.msra.mxu0 0
        %540 = vmatprep.subr.bf16.mxu0 0
        %541 = vmatpush1.bf16.msra.mxu0 0
        %542 = vmatprep.subr.bf16.mxu0 0
        %543 = vmatpush1.bf16.msra.mxu0 0
        %544 = vmatprep.subr.bf16.mxu0 0
        %545 = vmatpush1.bf16.msra.mxu0 0
        %546 = vmatprep.subr.bf16.mxu0 0
        %547 = vmatpush1.bf16.msra.mxu0 0
        %548 = vmatprep.subr.bf16.mxu0 0
        %549 = vmatpush1.bf16.msra.mxu0 0
        %550 = vmatprep.subr.bf16.mxu0 0
        %551 = vmatpush1.bf16.msra.mxu0 0
        %552 = vmatprep.mubr.bf16.mxu0 0
        %553 = vmatmul.mubr.bf16.gmra.mrb[0].mxu0 %v455
        %v554 = vpop.f32.mrb[0].mxu0
        %v555 = vadd.f32 0.0, %v554
        %v556 = vpop.f32.mrb[0].mxu0
        %v557 = vpop.f32.mrb[0].mxu0
        %v558 = vpop.f32.mrb[0].mxu0
        %559 = vdwg.mxu0
        %v560 = vld [vmem:[%s4] sm:$0xf]
        %v561 = vld [vmem:[%s4 + $0x4] sm:$0xf]
        %v562 = vld [vmem:[%s4 + $0x8] sm:$0xf]
        %v563 = vld [vmem:[%s4 + $0xc] sm:$0xf]
        %v564 = vld [vmem:[%s4 + $0x10] sm:$0xf]
        %v565 = vld [vmem:[%s4 + $0x14] sm:$0xf]
        %v566 = vld [vmem:[%s4 + $0x18] sm:$0xf]
        %v567 = vld [vmem:[%s4 + $0x1c] sm:$0xf]
        %v568 = vld [vmem:[%s4 + $0x20] sm:$0xf]
        %v569 = vld [vmem:[%s4 + $0x24] sm:$0xf]
        %v570 = vld [vmem:[%s4 + $0x28] sm:$0xf]
        %v571 = vld [vmem:[%s4 + $0x2c] sm:$0xf]
        %v572 = vld [vmem:[%s4 + $0x30] sm:$0xf]
        %v573 = vld [vmem:[%s4 + $0x34] sm:$0xf]
        %v574 = vld [vmem:[%s4 + $0x38] sm:$0xf]
        %v575 = vld [vmem:[%s4 + $0x3c] sm:$0xf]
        %v592 = vunpack.c.l.b16 %v560
        %v593 = vunpack.c.l.b16 %v561
        %v594 = vunpack.c.l.b16 %v562
        %v595 = vunpack.c.l.b16 %v563
        %v596 = vunpack.c.l.b16 %v564
        %v597 = vunpack.c.l.b16 %v565
        %v598 = vunpack.c.l.b16 %v566
        %v599 = vunpack.c.l.b16 %v567
        %v600 = vunpack.c.l.b16 %v568
        %v601 = vunpack.c.l.b16 %v569
        %v602 = vunpack.c.l.b16 %v570
        %v603 = vunpack.c.l.b16 %v571
        %v604 = vunpack.c.l.b16 %v572
        %v605 = vunpack.c.l.b16 %v573
        %v606 = vunpack.c.l.b16 %v574
        %v607 = vunpack.c.l.b16 %v575
        %v608 = vpack.c.b16 %v593, %v592
        %v609 = vpack.c.b16 %v595, %v594
        %v610 = vpack.c.b16 %v597, %v596
        %v611 = vpack.c.b16 %v599, %v598
        %v612 = vpack.c.b16 %v601, %v600
        %v613 = vpack.c.b16 %v603, %v602
        %v614 = vpack.c.b16 %v605, %v604
        %v615 = vpack.c.b16 %v607, %v606
        %624 = vmatprep.subr.bf16.mxu0 0
        %625 = vmatpush1.bf16.msra.mxu0 %v608
        %626 = vmatprep.subr.bf16.mxu0 0
        %627 = vmatpush1.bf16.msra.mxu0 %v609
        %628 = vmatprep.subr.bf16.mxu0 0
        %629 = vmatpush1.bf16.msra.mxu0 %v610
        %630 = vmatprep.subr.bf16.mxu0 0
        %631 = vmatpush1.bf16.msra.mxu0 %v611
        %632 = vmatprep.subr.bf16.mxu0 0
        %633 = vmatpush1.bf16.msra.mxu0 %v612
        %634 = vmatprep.subr.bf16.mxu0 0
        %635 = vmatpush1.bf16.msra.mxu0 %v613
        %636 = vmatprep.subr.bf16.mxu0 0
        %637 = vmatpush1.bf16.msra.mxu0 %v614
        %638 = vmatprep.subr.bf16.mxu0 0
        %639 = vmatpush1.bf16.msra.mxu0 %v615
        %640 = vmatprep.subr.bf16.mxu0 0
        %641 = vmatpush1.bf16.msra.mxu0 0
        %642 = vmatprep.subr.bf16.mxu0 0
        %643 = vmatpush1.bf16.msra.mxu0 0
        %644 = vmatprep.subr.bf16.mxu0 0
        %645 = vmatpush1.bf16.msra.mxu0 0
        %646 = vmatprep.subr.bf16.mxu0 0
        %647 = vmatpush1.bf16.msra.mxu0 0
        %648 = vmatprep.subr.bf16.mxu0 0
        %649 = vmatpush1.bf16.msra.mxu0 0
        %650 = vmatprep.subr.bf16.mxu0 0
        %651 = vmatpush1.bf16.msra.mxu0 0
        %652 = vmatprep.subr.bf16.mxu0 0
        %653 = vmatpush1.bf16.msra.mxu0 0
        %654 = vmatprep.subr.bf16.mxu0 0
        %655 = vmatpush1.bf16.msra.mxu0 0
        %656 = vmatprep.mubr.bf16.mxu0 0
        %657 = vmatmul.mubr.bf16.gmra.mrb[0].mxu0 %v455
        %v658 = vpop.f32.mrb[0].mxu0
        %v659 = vadd.f32 0.0, %v658
        %v660 = vpop.f32.mrb[0].mxu0
        %v661 = vpop.f32.mrb[0].mxu0
        %v662 = vpop.f32.mrb[0].mxu0
        %663 = vdwg.mxu0
        %v664 = vpack.c.bf16 %v555, %v555
        %v665 = vpack.c.bf16 %v659, %v659
        %v666 = vld [vmem:[#allocation2] sm:$0xf]
        %v667 = vld [vmem:[%s334] sm:$0xff]
        %vm668 = vcmask 261120
        %v670 = vsel %vm668, %v666, 0
        %v673 = vsel %vm668, %v664, 0
        %675 = vmatprep.subr.bf16.mxu0 0
        %676 = vmatpush1.bf16.xpose.msra.mxu0 %v673
        %677 = vmatprep.subr.bf16.mxu0 0
        %678 = vmatpush1.bf16.xpose.msra.mxu0 0
        %679 = vmatprep.subr.bf16.mxu0 0
        %680 = vmatpush1.bf16.xpose.msra.mxu0 0
        %681 = vmatprep.subr.bf16.mxu0 0
        %682 = vmatpush1.bf16.xpose.msra.mxu0 0
        %683 = vmatprep.subr.bf16.mxu0 0
        %684 = vmatpush1.bf16.xpose.msra.mxu0 0
        %685 = vmatprep.subr.bf16.mxu0 0
        %686 = vmatpush1.bf16.xpose.msra.mxu0 0
        %687 = vmatprep.subr.bf16.mxu0 0
        %688 = vmatpush1.bf16.xpose.msra.mxu0 0
        %689 = vmatprep.subr.bf16.mxu0 0
        %690 = vmatpush1.bf16.xpose.msra.mxu0 0
        %691 = vmatprep.subr.bf16.mxu0 0
        %692 = vmatpush1.bf16.xpose.msra.mxu0 0
        %693 = vmatprep.subr.bf16.mxu0 0
        %694 = vmatpush1.bf16.xpose.msra.mxu0 0
        %695 = vmatprep.subr.bf16.mxu0 0
        %696 = vmatpush1.bf16.xpose.msra.mxu0 0
        %697 = vmatprep.subr.bf16.mxu0 0
        %698 = vmatpush1.bf16.xpose.msra.mxu0 0
        %699 = vmatprep.subr.bf16.mxu0 0
        %700 = vmatpush1.bf16.xpose.msra.mxu0 0
        %701 = vmatprep.subr.bf16.mxu0 0
        %702 = vmatpush1.bf16.xpose.msra.mxu0 0
        %703 = vmatprep.subr.bf16.mxu0 0
        %704 = vmatpush1.bf16.xpose.msra.mxu0 0
        %705 = vmatprep.subr.bf16.mxu0 0
        %706 = vmatpush1.bf16.xpose.msra.mxu0 0
        %707 = vmatprep.mubr.bf16.mxu0 0
        %708 = vmatmul.mubr.bf16.gmra.mrb[0].mxu0 %v670
        %v709 = vpop.f32.mrb[0].mxu0
        %v710 = vadd.f32 %v667, %v709
        %v711 = vpop.f32.mrb[0].mxu0
        %v712 = vpop.f32.mrb[0].mxu0
        %v713 = vpop.f32.mrb[0].mxu0
        %714 = vdwg.mxu0
        %v715 = vld [vmem:[#allocation3] sm:$0xff]
        %vm716 = vcmask 64512
        %v717 = vsel %vm716, %v710, -inf
        %718 = vmax.xlane.f32.xlu0 %v717
        %v719 = vpop.xlane.xlu0 %718
        %v720 = vmax.f32 %v715, %v719
        %v721 = vsub.f32 %v715, %v720
        %v722 = vmul.f32 %v721, 1.442695
        %v723 = vpow.pop %v722
        %725 = vset.pattern.permute.xlu0 0
        %726 = vperm.xlu0 %725, %v720
        %v727 = vpop.permute.xlu0 %726
        %v729 = vsub.f32 %v710, %v727
        %v730 = vmul.f32 %v729, 1.442695
        %v731 = vpow.pop %v730
        %v732 = vld [vmem:[#allocation4] sm:$0xff]
        %v733 = vmul.f32 %v723, %v732
        %v734 = vsel %vm716, %v731, 0.0
        %735 = vadd.xlane.f32.xlu0 %v734
        %v736 = vpop.xlane.xlu0 %735
        %v737 = vadd.f32 %v733, %v736
        %vm738 = vcmask 7168
        %739 = vst.msk [vmem:[#allocation4] sm:$0xff] %vm738, %v737
        %v740 = vld [vmem:[#allocation5] sm:$0xff]
        %742 = vset.pattern.permute.xlu0 0
        %743 = vperm.xlu0 %742, %v723
        %v744 = vpop.permute.xlu0 %743
        %v746 = vmul.f32 %v744, %v740
        %v747 = vpack.c.bf16 %v731, %v731
        %v749 = vsel %vm716, %v747, 0
        %vm751 = vcmask 1043456
        %v753 = vsel %vm751, %v665, 0
        %755 = vmatprep.subr.bf16.mxu0 0
        %756 = vmatpush1.bf16.msra.mxu0 %v753
        %757 = vmatprep.subr.bf16.mxu0 0
        %758 = vmatpush1.bf16.msra.mxu0 0
        %759 = vmatprep.subr.bf16.mxu0 0
        %760 = vmatpush1.bf16.msra.mxu0 0
        %761 = vmatprep.subr.bf16.mxu0 0
        %762 = vmatpush1.bf16.msra.mxu0 0
        %763 = vmatprep.subr.bf16.mxu0 0
        %764 = vmatpush1.bf16.msra.mxu0 0
        %765 = vmatprep.subr.bf16.mxu0 0
        %766 = vmatpush1.bf16.msra.mxu0 0
        %767 = vmatprep.subr.bf16.mxu0 0
        %768 = vmatpush1.bf16.msra.mxu0 0
        %769 = vmatprep.subr.bf16.mxu0 0
        %770 = vmatpush1.bf16.msra.mxu0 0
        %771 = vmatprep.subr.bf16.mxu0 0
        %772 = vmatpush1.bf16.msra.mxu0 0
        %773 = vmatprep.subr.bf16.mxu0 0
        %774 = vmatpush1.bf16.msra.mxu0 0
        %775 = vmatprep.subr.bf16.mxu0 0
        %776 = vmatpush1.bf16.msra.mxu0 0
        %777 = vmatprep.subr.bf16.mxu0 0
        %778 = vmatpush1.bf16.msra.mxu0 0
        %779 = vmatprep.subr.bf16.mxu0 0
        %780 = vmatpush1.bf16.msra.mxu0 0
        %781 = vmatprep.subr.bf16.mxu0 0
        %782 = vmatpush1.bf16.msra.mxu0 0
        %783 = vmatprep.subr.bf16.mxu0 0
        %784 = vmatpush1.bf16.msra.mxu0 0
        %785 = vmatprep.subr.bf16.mxu0 0
        %786 = vmatpush1.bf16.msra.mxu0 0
        %787 = vmatprep.mubr.bf16.mxu0 0
        %788 = vmatmul.mubr.bf16.gmra.mrb[0].mxu0 %v749
        %v789 = vpop.f32.mrb[0].mxu0
        %v790 = vadd.f32 0.0, %v789
        %v791 = vpop.f32.mrb[0].mxu0
        %v792 = vpop.f32.mrb[0].mxu0
        %v793 = vpop.f32.mrb[0].mxu0
        %794 = vdwg.mxu0
        %v795 = vadd.f32 %v746, %v790
        %796 = vst.msk [vmem:[#allocation5] sm:$0xff] %vm668, %v795
        %797 = vst.msk [vmem:[#allocation3] sm:$0xff] %vm738, %v720
        // Predicated region
        $region49: #{tpu_custom_call.1} parent=43 // pred_check
          %p798 = pneg %p336
        $region50: #{tpu_custom_call.1} parent=43 // pred_check_branch
          %800 = sbr.rel (%p798) target = $region52
        $region51: #{tpu_custom_call.1} parent=43 // pred_region
          %v801 = vld [vmem:[#allocation4] sm:$0xff]
          %v802 = vrcp.pop %v801
          %v803 = vld [vmem:[#allocation5] sm:$0xff]
          %805 = vset.pattern.permute.xlu0 0
          %806 = vperm.xlu0 %805, %v802
          %v807 = vpop.permute.xlu0 %806
          %v809 = vmul.f32 %v803, %v807
          %810 = vst.msk [vmem:[%s313] sm:$0xff] %vm668, %v809
        $region52: #{tpu_custom_call.1} parent=43 // pred_fallthru
          _
        %s811 = sand.u32 %s196, 1
        %s812 = scalar_lea.sflag [#allocation7], %s811
        %s813 = sand.u32 %s196, 1
        %s814 = smul.addr %s813, 8
        %s815 = scalar_lea.vmem [#allocation6], %s814
        // Predicated region
        $region53: #{tpu_custom_call.1} parent=43 // pred_check
          %p816 = pneg %p206
        $region54: #{tpu_custom_call.1} parent=43 // pred_check_branch
          %818 = sbr.rel (%p816) target = $region56
        $region55: #{tpu_custom_call.1} parent=43 // pred_region
          %s820 = ssub.s32 128, 128
          %821 = vsyncadd %s812, %s820
          %s822 = sadd.s32 %s26, %s25
          %s823 = smul.addr %s822, 128
          %s824 = scalar_lea.hbm %s6, %s823
          %s826 = sshll.u32 %s815, 4
          %s827 = int_to_ptr.vmem [resolvable:$true] %s826
          %829 = dma.vmem_to_hbm [thread:$0]  %s827, 128, %s824, %s812
        $region56: #{tpu_custom_call.1} parent=43 // pred_fallthru
          _
      $region44: #{tpu_custom_call.1} parent=5 // pred_fallthru
        _
      %p830 = scmp.le.s32.totalorder 2, %s15
      // Predicated region
      $region57: #{tpu_custom_call.1} parent=5 // pred_check
        %p831 = pneg %p830
      $region58: #{tpu_custom_call.1} parent=5 // pred_check_branch
        %833 = sbr.rel (%p831) target = $region60
      $region59: #{tpu_custom_call.1} parent=5 // pred_region
        %s834 = ssub.s32 %s15, 2
        // Predicated region
        $region61: #{tpu_custom_call.1} parent=59 // pred_check
          %p835 = pneg %p212
        $region62: #{tpu_custom_call.1} parent=59 // pred_check_branch
          %837 = sbr.rel (%p835) target = $region64
        $region63: #{tpu_custom_call.1} parent=59 // pred_region
          %s838 = sand.u32 %s197, 1
          %s839 = scalar_lea.sflag [#allocation7], %s838
          %s840 = sand.u32 %s197, 1
          %s841 = smul.addr %s840, 8
          %s842 = scalar_lea.vmem [#allocation6], %s841
          %843 = dma.done %s839, 128
        $region64: #{tpu_custom_call.1} parent=59 // pred_fallthru
          _
      $region60: #{tpu_custom_call.1} parent=5 // pred_fallthru
        _
    $region6: #{tpu_custom_call.1} parent=1 // loop_footer
      %s19 = sadd.s32 1, %s15
    $region7: #{tpu_custom_call.1} parent=1 // loop_footer_branch
      %14 = sbr.rel target = $region3
    $region8: #{tpu_custom_call.1} parent=1 // loop_exit
      _
    %844 = vsyncpa [#allocation7], 1
    %s845 = scalar_lea.sflag [#allocation7], 1
    %846 = vsyncpa %s845, 1

</llo_original>
